<compile_context>
chip_gen: v6e
topology: v6e:2x2x1
jax: 0.10.0
libtpu: 0.0.40
codegen_flags: <defaults>
</compile_context>

<pallas_src>
import functools

import jax
import jax.numpy as jnp
from jax import lax
from jax.experimental import pallas as pl
from jax.experimental.pallas import tpu as pltpu

_LANE = 128
_EPS = 1e-5
_NEG_SLOPE = 0.2
_VMEM_LIMIT_BYTES = 32 * 1024 * 1024  # safe on v5e/v6e (128 MiB) and v7x (64 MiB)


def _round_up(x, m):
    return (x + m - 1) // m * m


def _pick_block(n, block_m):
    """Block size (multiple of 16 for bf16 sublanes) and padded row count."""
    bm = min(block_m, _round_up(n, 16))
    return bm, _round_up(n, bm)


def _pad_rows(a, n_pad):
    return jnp.zeros((n_pad,) + a.shape[1:], a.dtype).at[: a.shape[0]].set(a)


def _pack_w(w, c_in, c_in_store, c_out_store):
    """(7*c_in, c_out) logical conv weight -> (7*c_in_store, c_out_store), zero-padded."""
    c_out = w.shape[1]
    w7 = w.reshape(7, c_in, c_out)
    wp = jnp.zeros((7, c_in_store, c_out_store), jnp.float32)
    wp = wp.at[:, :c_in, :c_out].set(w7)
    return wp.reshape(7 * c_in_store, c_out_store)


def _pack_vec(v, c_store):
    return jnp.zeros((1, c_store), jnp.float32).at[0, : v.shape[0]].set(v)


# ----------------------------- Pallas kernels -----------------------------

def _conv_stats_kernel(xg_ref, w_ref, b_ref, y_ref, sum_ref, ssq_ref,
                       acc_sum, acc_ssq, *, m_valid, block_m):
    """Pass 1: y = xg @ w + b (bf16 in, f32 acc) and masked per-channel sum/sumsq."""
    i = pl.program_id(0)

    @pl.when(i == 0)
    def _():
        acc_sum[...] = jnp.zeros_like(acc_sum)
        acc_ssq[...] = jnp.zeros_like(acc_ssq)

    y = jnp.dot(xg_ref[...], w_ref[...], preferred_element_type=jnp.float32) + b_ref[...]
    y_ref[...] = y

    # Mask rows past the true node count so padding never contaminates BN stats.
    row = i * block_m + lax.broadcasted_iota(jnp.int32, (block_m, 1), 0)
    valid = (row < m_valid).astype(jnp.float32)
    yv = y * valid
    acc_sum[...] += jnp.sum(yv, axis=0, keepdims=True)
    acc_ssq[...] += jnp.sum(yv * yv, axis=0, keepdims=True)

    @pl.when(i == pl.num_programs(0) - 1)
    def _():
        sum_ref[...] = acc_sum[...]
        ssq_ref[...] = acc_ssq[...]


def _bn_lrelu_kernel(y_ref, sum_ref, ssq_ref, g_ref, bt_ref, o_ref, *, m_valid):
    """Pass 2: BatchNorm1d (batch stats) + affine + LeakyReLU(0.2), tiled over M."""
    inv_m = 1.0 / m_valid
    mean = sum_ref[...] * inv_m
    var = jnp.maximum(ssq_ref[...] * inv_m - mean * mean, 0.0)
    scale = g_ref[...] * lax.rsqrt(var + _EPS)       # rsqrt -> EUP slot
    shift = bt_ref[...] - mean * scale
    z = y_ref[...] * scale + shift
    o_ref[...] = jnp.where(z >= 0.0, z, _NEG_SLOPE * z).astype(o_ref.dtype)


def _mean_fc_kernel(a_ref, w_ref, b_ref, o_ref, acc_ref, *, m_valid, block_m):
    """Global node-mean (masked) accumulated over the grid, then fc on last step."""
    i = pl.program_id(0)

    @pl.when(i == 0)
    def _():
        acc_ref[...] = jnp.zeros_like(acc_ref)

    row = i * block_m + lax.broadcasted_iota(jnp.int32, (block_m, 1), 0)
    valid = (row < m_valid).astype(jnp.float32)
    acc_ref[...] += jnp.sum(a_ref[...].astype(jnp.float32) * valid, axis=0, keepdims=True)

    @pl.when(i == pl.num_programs(0) - 1)
    def _():
        mean = acc_ref[...] * (1.0 / m_valid)
        o_ref[...] = (
            jnp.dot(mean, w_ref[...], preferred_element_type=jnp.float32) + b_ref[...]
        )


# ------------------------------ Pallas wrappers ----------------------------

def conv_stats_pallas(xg, w, b, *, m_valid, block_m):
    m_pad, k = xg.shape
    c = w.shape[1]
    kern = functools.partial(_conv_stats_kernel, m_valid=m_valid, block_m=block_m)
    return pl.pallas_call(
        kern,
        grid=(m_pad // block_m,),
        in_specs=[
            pl.BlockSpec((block_m, k), lambda i: (i, 0)),
            pl.BlockSpec((k, c), lambda i: (0, 0)),
            pl.BlockSpec((1, c), lambda i: (0, 0)),
        ],
        out_specs=(
            pl.BlockSpec((block_m, c), lambda i: (i, 0)),
            pl.BlockSpec((1, c), lambda i: (0, 0)),
            pl.BlockSpec((1, c), lambda i: (0, 0)),
        ),
        out_shape=(
            jax.ShapeDtypeStruct((m_pad, c), jnp.float32),
            jax.ShapeDtypeStruct((1, c), jnp.float32),
            jax.ShapeDtypeStruct((1, c), jnp.float32),
        ),
        scratch_shapes=[
            pltpu.VMEM((1, c), jnp.float32),
            pltpu.VMEM((1, c), jnp.float32),
        ],
        compiler_params=pltpu.CompilerParams(
            dimension_semantics=("arbitrary",),  # stats accumulate across this axis
            vmem_limit_bytes=_VMEM_LIMIT_BYTES,
        ),
    )(xg, w.astype(jnp.bfloat16), b)


def bn_lrelu_pallas(y, s_sum, s_ssq, gamma, beta, *, m_valid, block_m):
    m_pad, c = y.shape
    kern = functools.partial(_bn_lrelu_kernel, m_valid=m_valid)
    return pl.pallas_call(
        kern,
        grid=(m_pad // block_m,),
        in_specs=[
            pl.BlockSpec((block_m, c), lambda i: (i, 0)),
            pl.BlockSpec((1, c), lambda i: (0, 0)),
            pl.BlockSpec((1, c), lambda i: (0, 0)),
            pl.BlockSpec((1, c), lambda i: (0, 0)),
            pl.BlockSpec((1, c), lambda i: (0, 0)),
        ],
        out_specs=pl.BlockSpec((block_m, c), lambda i: (i, 0)),
        out_shape=jax.ShapeDtypeStruct((m_pad, c), jnp.bfloat16),
        compiler_params=pltpu.CompilerParams(
            dimension_semantics=("parallel",),   # independent tiles -> both TCs on v7x
            vmem_limit_bytes=_VMEM_LIMIT_BYTES,
        ),
    )(y, s_sum, s_ssq, gamma, beta)


def mean_fc_pallas(act, w_fc, b_fc, *, m_valid, block_m):
    m_pad, c = act.shape
    n = w_fc.shape[1]
    kern = functools.partial(_mean_fc_kernel, m_valid=m_valid, block_m=block_m)
    return pl.pallas_call(
        kern,
        grid=(m_pad // block_m,),
        in_specs=[
            pl.BlockSpec((block_m, c), lambda i: (i, 0)),
            pl.BlockSpec((c, n), lambda i: (0, 0)),
            pl.BlockSpec((1, n), lambda i: (0, 0)),
        ],
        out_specs=pl.BlockSpec((1, n), lambda i: (0, 0)),
        out_shape=jax.ShapeDtypeStruct((1, n), jnp.float32),
        scratch_shapes=[pltpu.VMEM((1, c), jnp.float32)],
        compiler_params=pltpu.CompilerParams(
            dimension_semantics=("arbitrary",),
            vmem_limit_bytes=_VMEM_LIMIT_BYTES,
        ),
    )(act, w_fc, b_fc)


def conv_bn_lrelu(act, neigh, w_packed, b, gamma, beta, *, m_valid, block_m):
    """onering_conv_layer + BatchNorm1d + LeakyReLU(0.2), two tiled Pallas passes."""
    m_out_pad = neigh.shape[0]
    c_in_store = act.shape[1]
    # 7-ring gather: mat = x[neigh].view(N, 7*C)  (kept as an XLA gather for now)
    # TODO(synk): fuse this gather into pass 1 (scalar-prefetched indices + per-tile
    #             DMA gather) to drop the 7x-expanded HBM intermediate.
    xg = act[neigh.reshape(-1)].reshape(m_out_pad, 7 * c_in_store)
    y, s_sum, s_ssq = conv_stats_pallas(xg, w_packed, b, m_valid=m_valid, block_m=block_m)
    return bn_lrelu_pallas(y, s_sum, s_ssq, gamma, beta, m_valid=m_valid, block_m=block_m)


def mean_pool(act, pool_idx):
    """pool_layer(neigh_fine, 'mean'): mean of the 7 gathered fine-level rows."""
    n_out = pool_idx.shape[0]
    g = act[pool_idx.reshape(-1)].astype(jnp.float32).reshape(n_out, 7, act.shape[1])
    return jnp.mean(g, axis=1).astype(jnp.bfloat16)


# --------------------------- svgg forward (Pallas) --------------------------

def _pack_conv(p, conv, bn, c_in, c_in_store, c_out_store):
    return (
        _pack_w(p[conv + "_w"], c_in, c_in_store, c_out_store),
        _pack_vec(p[conv + "_b"], c_out_store),
        _pack_vec(p[bn + "_g"], c_out_store),
        _pack_vec(p[bn + "_b"], c_out_store),
    )


def svgg_forward(x, p, *, block_m=512):
    """x: (N0, in_ch) f32 -> (1, out_ch) f32.  block_m: 512-2048 on v5e/v6e, halve on v7x."""
    in_ch = x.shape[1]
    c1 = p["conv1_w"].shape[1]
    c2 = p["conv5_w"].shape[1]
    out_ch = p["fc_w"].shape[1]
    cp = _LANE                                   # lane-padded channel storage
    n0 = p["neigh0"].shape[0]
    n1 = p["neigh1"].shape[0]

    bm0, n0p = _pick_block(n0, block_m)
    bm1, n1p = _pick_block(n1, block_m)

    # padded index tables (pad rows point at node 0; masked out of all reductions)
    nb0 = _pad_rows(p["neigh0"], n0p)
    nb1 = _pad_rows(p["neigh1"], n1p)
    pool_idx = _pad_rows(p["neigh0"][:n1], n1p)  # pool_layer uses the fine-level table

    # packed / lane-padded parameters
    l1 = _pack_conv(p, "conv1", "bn1", in_ch, in_ch, cp)
    l2 = _pack_conv(p, "conv2", "bn2", c1, cp, cp)
    l3 = _pack_conv(p, "conv3", "bn3", c1, cp, cp)
    l4 = _pack_conv(p, "conv4", "bn4", c1, cp, cp)
    l5 = _pack_conv(p, "conv5", "bn5", c2, cp, cp)
    w_fc = jnp.zeros((cp, _LANE), jnp.float32).at[:c2, :out_ch].set(p["fc_w"])
    b_fc = _pack_vec(p["fc_b"], _LANE)

    # level 0 (N0 nodes)
    act = _pad_rows(x.astype(jnp.bfloat16), n0p)
    for (w, b, g, t) in (l1, l2, l3):
        act = conv_bn_lrelu(act, nb0, w, b, g, t, m_valid=n0, block_m=bm0)

    # mean pool to level 1 (N1 = (N0 + 6) / 4 nodes)
    act = mean_pool(act, pool_idx)

    for (w, b, g, t) in (l4, l5):
        act = conv_bn_lrelu(act, nb1, w, b, g, t, m_valid=n1, block_m=bm1)

    # global node mean + fc (fused accumulation kernel)
    out = mean_fc_pallas(act, w_fc, b_fc, m_valid=n1, block_m=bm1)
    return out[:, :out_ch]


# --------------------------- pure-JAX f32 reference --------------------------

def reference_forward(x, p):
    def conv_bn(act, neigh, w, b, g, bt):
        n = neigh.shape[0]
        xg = act[neigh.reshape(-1)].reshape(n, -1)
        y = xg @ w + b
        mean = jnp.mean(y, axis=0, keepdims=True)
        var = jnp.mean((y - mean) ** 2, axis=0, keepdims=True)
        z = (y - mean) * lax.rsqrt(var + _EPS) * g + bt
        return jnp.where(z >= 0, z, _NEG_SLOPE * z)

    h = conv_bn(x, p["neigh0"], p["conv1_w"], p["conv1_b"], p["bn1_g"], p["bn1_b"])
    h = conv_bn(h, p["neigh0"], p["conv2_w"], p["conv2_b"], p["bn2_g"], p["bn2_b"])
    h = conv_bn(h, p["neigh0"], p["conv3_w"], p["conv3_b"], p["bn3_g"], p["bn3_b"])
    n1 = p["neigh1"].shape[0]
    h = h[p["neigh0"][:n1].reshape(-1)].reshape(n1, 7, -1).mean(axis=1)
    h = conv_bn(h, p["neigh1"], p["conv4_w"], p["conv4_b"], p["bn4_g"], p["bn4_b"])
    h = conv_bn(h, p["neigh1"], p["conv5_w"], p["conv5_b"], p["bn5_g"], p["bn5_b"])
    m = jnp.mean(h, axis=0, keepdims=True)
    return m @ p["fc_w"] + p["fc_b"]


# ----------------------------- parameter setup ------------------------------

def make_params(key, in_ch, out_ch, n0, n1):
    ks = iter(jax.random.split(key, 26))

    def w(shape, scale=0.1):
        return (scale * jax.random.normal(next(ks), shape)).astype(jnp.float32)

    def bn(c):
        g = (1.0 + 0.1 * jax.random.normal(next(ks), (c,))).astype(jnp.float32)
        return g, w((c,))

    c1, c2 = 32, 64  # chs = [in_ch, 32, 64] for n_res=2
    p = {}
    p["conv1_w"], p["conv1_b"] = w((7 * in_ch, c1)), w((c1,))
    p["bn1_g"], p["bn1_b"] = bn(c1)
    p["conv2_w"], p["conv2_b"] = w((7 * c1, c1)), w((c1,))
    p["bn2_g"], p["bn2_b"] = bn(c1)
    p["conv3_w"], p["conv3_b"] = w((7 * c1, c1)), w((c1,))
    p["bn3_g"], p["bn3_b"] = bn(c1)
    p["conv4_w"], p["conv4_b"] = w((7 * c1, c2)), w((c2,))
    p["bn4_g"], p["bn4_b"] = bn(c2)
    p["conv5_w"], p["conv5_b"] = w((7 * c2, c2)), w((c2,))
    p["bn5_g"], p["bn5_b"] = bn(c2)
    p["fc_w"], p["fc_b"] = w((c2, out_ch)), w((out_ch,))
    # TODO(synk): real model loads icosahedral 1-ring tables via Get_neighs_order;
    # synthetic in-range tables are used here so the script is self-contained.
    p["neigh0"] = jax.random.randint(next(ks), (n0, 7), 0, n0, jnp.int32)
    p["neigh1"] = jax.random.randint(next(ks), (n1, 7), 0, n1, jnp.int32)
    return p


# ---------------------------------- main -------------------------------------

if __name__ == "__main__":
    key = jax.random.PRNGKey(0)
    kx, kp = jax.random.split(key)

    # svgg(in_ch=4, out_ch=10, level=3, n_res=2): icosahedron sizes 162 -> 42 nodes.
    in_ch, out_ch = 4, 10
    n0, n1 = 162, 42

    x = jax.random.normal(kx, (n0, in_ch), dtype=jnp.float32)
    params = make_params(kp, in_ch, out_ch, n0, n1)

    # block_m=64 at these tiny test sizes so the level-0 grid has 3 steps and the
    # cross-tile BN-statistics accumulation path is actually exercised.
    out = svgg_forward(x, params, block_m=64)
    out = jax.block_until_ready(out)

    assert out.shape == (1, out_ch), out.shape
    assert bool(jnp.all(jnp.isfinite(out)))

    ref = reference_forward(x, params)
    err = float(jnp.max(jnp.abs(out - ref)))
    assert err < 5e-2, f"mismatch vs f32 reference: max|diff|={err}"

    print("KERNEL_OK")
</pallas_src>

<mosaic_0001>
module attributes {stable_mosaic.version = 11 : i64} {
  func.func @_conv_stats_kernel(%arg0: i32, %arg1: memref<64x28xbf16, #tpu.memory_space<vmem>>, %arg2: memref<28x128xbf16, #tpu.memory_space<vmem>>, %arg3: memref<1x128xf32, #tpu.memory_space<vmem>>, %arg4: memref<64x128xf32, #tpu.memory_space<vmem>>, %arg5: memref<1x128xf32, #tpu.memory_space<vmem>>, %arg6: memref<1x128xf32, #tpu.memory_space<vmem>>, %arg7: memref<1x128xf32, #tpu.memory_space<vmem>>, %arg8: memref<1x128xf32, #tpu.memory_space<vmem>>) attributes {dimension_semantics = [#tpu.dimension_semantics<arbitrary>], iteration_bounds = array<i64: 3>, scalar_prefetch = 0 : i64, scratch_operands = 2 : i64, tpu.core_type = #tpu.core_type<tc>, window_params = [{transform_indices = @transform_0, window_bounds = array<i64: 64, 28>}, {pipeline_mode = #tpu.pipeline_mode<synchronous>, transform_indices = @transform_1, window_bounds = array<i64: 28, 128>}, {pipeline_mode = #tpu.pipeline_mode<synchronous>, transform_indices = @transform_2, window_bounds = array<i64: 1, 128>}, {transform_indices = @transform_3, window_bounds = array<i64: 64, 128>}, {pipeline_mode = #tpu.pipeline_mode<synchronous>, transform_indices = @transform_4, window_bounds = array<i64: 1, 128>}, {pipeline_mode = #tpu.pipeline_mode<synchronous>, transform_indices = @transform_5, window_bounds = array<i64: 1, 128>}]} {
    %c0_i32 = arith.constant 0 : i32
    %0 = arith.cmpi eq, %arg0, %c0_i32 : i32
    %1 = arith.extui %0 : i1 to i32
    %c0_i32_0 = arith.constant 0 : i32
    %2 = arith.cmpi ne, %1, %c0_i32_0 : i32
    scf.if %2 {
      %cst_19 = arith.constant 0.000000e+00 : f32
      %34 = vector.broadcast %cst_19 : f32 to vector<1x128xf32>
      %c0_20 = arith.constant 0 : index
      %c0_21 = arith.constant 0 : index
      %35 = vector.load %arg7[%c0_20, %c0_21] : memref<1x128xf32, #tpu.memory_space<vmem>>, vector<1x128xf32>
      tpu.vector_store %arg7[%c0_20, %c0_21], %34 {strides = array<i32>} : memref<1x128xf32, #tpu.memory_space<vmem>>, vector<1x128xf32>,
      %cst_22 = arith.constant 0.000000e+00 : f32
      %36 = vector.broadcast %cst_22 : f32 to vector<1x128xf32>
      %c0_23 = arith.constant 0 : index
      %c0_24 = arith.constant 0 : index
      %37 = vector.load %arg8[%c0_23, %c0_24] : memref<1x128xf32, #tpu.memory_space<vmem>>, vector<1x128xf32>
      tpu.vector_store %arg8[%c0_23, %c0_24], %36 {strides = array<i32>} : memref<1x128xf32, #tpu.memory_space<vmem>>, vector<1x128xf32>,
    } else {
    }
    %c0 = arith.constant 0 : index
    %c0_1 = arith.constant 0 : index
    %3 = vector.load %arg1[%c0, %c0_1] : memref<64x28xbf16, #tpu.memory_space<vmem>>, vector<64x28xbf16>
    %c0_2 = arith.constant 0 : index
    %c0_3 = arith.constant 0 : index
    %4 = vector.load %arg2[%c0_2, %c0_3] : memref<28x128xbf16, #tpu.memory_space<vmem>>, vector<28x128xbf16>
    %cst = arith.constant dense<0.000000e+00> : vector<64x128xf32>
    %5 = tpu.matmul %3, %4, %cst {dimension_numbers = #tpu.dot_dimension_numbers<[1], [0], [0], [1], [0, 0, 1, 1], [], []>} : vector<64x28xbf16>, vector<28x128xbf16>, vector<64x128xf32> -> vector<64x128xf32>
    %c0_4 = arith.constant 0 : index
    %c0_5 = arith.constant 0 : index
    %6 = vector.load %arg3[%c0_4, %c0_5] : memref<1x128xf32, #tpu.memory_space<vmem>>, vector<1x128xf32>
    %7 = vector.broadcast %6 : vector<1x128xf32> to vector<64x128xf32>
    %8 = arith.addf %5, %7 : vector<64x128xf32>
    %c0_6 = arith.constant 0 : index
    %c0_7 = arith.constant 0 : index
    %9 = vector.load %arg4[%c0_6, %c0_7] : memref<64x128xf32, #tpu.memory_space<vmem>>, vector<64x128xf32>
    tpu.vector_store %arg4[%c0_6, %c0_7], %8 {strides = array<i32>} : memref<64x128xf32, #tpu.memory_space<vmem>>, vector<64x128xf32>,
    %c64_i32 = arith.constant 64 : i32
    %10 = arith.muli %arg0, %c64_i32 : i32
    %11 = tpu.iota {dimensions = array<i32: 0>} : vector<64x1xi32>
    %12 = vector.broadcast %10 : i32 to vector<64x1xi32>
    %13 = arith.addi %12, %11 : vector<64x1xi32>
    %c162_i32 = arith.constant 162 : i32
    %14 = vector.broadcast %c162_i32 : i32 to vector<64x1xi32>
    %15 = arith.cmpi slt, %13, %14 : vector<64x1xi32>
    %16 = arith.extui %15 : vector<64x1xi1> to vector<64x1xi32>
    %17 = arith.sitofp %16 : vector<64x1xi32> to vector<64x1xf32>
    %18 = vector.broadcast %17 : vector<64x1xf32> to vector<64x128xf32>
    %19 = arith.mulf %8, %18 : vector<64x128xf32>
    %c0_8 = arith.constant 0 : index
    %c0_9 = arith.constant 0 : index
    %20 = vector.load %arg7[%c0_8, %c0_9] : memref<1x128xf32, #tpu.memory_space<vmem>>, vector<1x128xf32>
    %cst_10 = arith.constant dense<0.000000e+00> : vector<128xf32>
    %21 = vector.multi_reduction <add>, %19, %cst_10 [0] : vector<64x128xf32> to vector<128xf32>
    %22 = vector.shape_cast %21 : vector<128xf32> to vector<1x128xf32>
    %23 = arith.addf %20, %22 : vector<1x128xf32>
    %c0_11 = arith.constant 0 : index
    %c0_12 = arith.constant 0 : index
    %24 = vector.load %arg7[%c0_11, %c0_12] : memref<1x128xf32, #tpu.memory_space<vmem>>, vector<1x128xf32>
    tpu.vector_store %arg7[%c0_11, %c0_12], %23 {strides = array<i32>} : memref<1x128xf32, #tpu.memory_space<vmem>>, vector<1x128xf32>,
    %c0_13 = arith.constant 0 : index
    %c0_14 = arith.constant 0 : index
    %25 = vector.load %arg8[%c0_13, %c0_14] : memref<1x128xf32, #tpu.memory_space<vmem>>, vector<1x128xf32>
    %26 = arith.mulf %19, %19 : vector<64x128xf32>
    %cst_15 = arith.constant dense<0.000000e+00> : vector<128xf32>
    %27 = vector.multi_reduction <add>, %26, %cst_15 [0] : vector<64x128xf32> to vector<128xf32>
    %28 = vector.shape_cast %27 : vector<128xf32> to vector<1x128xf32>
    %29 = arith.addf %25, %28 : vector<1x128xf32>
    %c0_16 = arith.constant 0 : index
    %c0_17 = arith.constant 0 : index
    %30 = vector.load %arg8[%c0_16, %c0_17] : memref<1x128xf32, #tpu.memory_space<vmem>>, vector<1x128xf32>
    tpu.vector_store %arg8[%c0_16, %c0_17], %29 {strides = array<i32>} : memref<1x128xf32, #tpu.memory_space<vmem>>, vector<1x128xf32>,
    %c2_i32 = arith.constant 2 : i32
    %31 = arith.cmpi eq, %arg0, %c2_i32 : i32
    %32 = arith.extui %31 : i1 to i32
    %c0_i32_18 = arith.constant 0 : i32
    %33 = arith.cmpi ne, %32, %c0_i32_18 : i32
    scf.if %33 {
      %c0_19 = arith.constant 0 : index
      %c0_20 = arith.constant 0 : index
      %34 = vector.load %arg7[%c0_19, %c0_20] : memref<1x128xf32, #tpu.memory_space<vmem>>, vector<1x128xf32>
      %c0_21 = arith.constant 0 : index
      %c0_22 = arith.constant 0 : index
      %35 = vector.load %arg5[%c0_21, %c0_22] : memref<1x128xf32, #tpu.memory_space<vmem>>, vector<1x128xf32>
      tpu.vector_store %arg5[%c0_21, %c0_22], %34 {strides = array<i32>} : memref<1x128xf32, #tpu.memory_space<vmem>>, vector<1x128xf32>,
      %c0_23 = arith.constant 0 : index
      %c0_24 = arith.constant 0 : index
      %36 = vector.load %arg8[%c0_23, %c0_24] : memref<1x128xf32, #tpu.memory_space<vmem>>, vector<1x128xf32>
      %c0_25 = arith.constant 0 : index
      %c0_26 = arith.constant 0 : index
      %37 = vector.load %arg6[%c0_25, %c0_26] : memref<1x128xf32, #tpu.memory_space<vmem>>, vector<1x128xf32>
      tpu.vector_store %arg6[%c0_25, %c0_26], %36 {strides = array<i32>} : memref<1x128xf32, #tpu.memory_space<vmem>>, vector<1x128xf32>,
    } else {
    }
    return
  }
  func.func @transform_0(%arg0: i32) -> (i32, i32) {
    %c0_i32 = arith.constant 0 : i32
    %c0_i32_0 = arith.constant 0 : i32
    return %arg0, %c0_i32 : i32, i32
  }
  func.func @transform_1(%arg0: i32) -> (i32, i32) {
    %c0_i32 = arith.constant 0 : i32
    %c0_i32_0 = arith.constant 0 : i32
    %c0_i32_1 = arith.constant 0 : i32
    return %c0_i32, %c0_i32_0 : i32, i32
  }
  func.func @transform_2(%arg0: i32) -> (i32, i32) {
    %c0_i32 = arith.constant 0 : i32
    %c0_i32_0 = arith.constant 0 : i32
    %c0_i32_1 = arith.constant 0 : i32
    return %c0_i32, %c0_i32_0 : i32, i32
  }
  func.func @transform_3(%arg0: i32) -> (i32, i32) {
    %c0_i32 = arith.constant 0 : i32
    %c0_i32_0 = arith.constant 0 : i32
    return %arg0, %c0_i32 : i32, i32
  }
  func.func @transform_4(%arg0: i32) -> (i32, i32) {
    %c0_i32 = arith.constant 0 : i32
    %c0_i32_0 = arith.constant 0 : i32
    %c0_i32_1 = arith.constant 0 : i32
    return %c0_i32, %c0_i32_0 : i32, i32
  }
  func.func @transform_5(%arg0: i32) -> (i32, i32) {
    %c0_i32 = arith.constant 0 : i32
    %c0_i32_0 = arith.constant 0 : i32
    %c0_i32_1 = arith.constant 0 : i32
    return %c0_i32, %c0_i32_0 : i32, i32
  }
}

</mosaic_0001>

<llo_original>
// kernel: tpu_custom_call.1
$region0: #{tpu_custom_call.1}
  #allocation0 [shape = 'u32[]', space=smem, size = 0x4, offset = 0x4, fixed_abs, tag = 'smem constant byte address 0x4 - core index']
  #allocation1 [shape = 'u32[144,128]{1,0:T(1,128)}', space=vmem, size = 0x12000, scoped, tag = 'internal scratch']
  #allocation2 [shape = 'f32[1,128]{1,0:T(1,128)}', space=vmem, size = 0x200, scoped, tag = 'scratch operand']
  #allocation3 [shape = 'f32[1,128]{1,0:T(1,128)}', space=vmem, size = 0x200, scoped, tag = 'scratch operand']
  %s0 = inlined_call_operand.vmem [shape: bf16[192,28], index: 0, kind: input, shape index: {}]
  %s1 = inlined_call_operand.vmem [shape: bf16[28,128], index: 1, kind: input, shape index: {}]
  %s2 = inlined_call_operand.vmem [shape: f32[1,128], index: 2, kind: input, shape index: {}]
  %s3 = inlined_call_operand.hbm [shape: f32[192,128], index: 3, kind: output, shape index: {0}]
  %s4 = inlined_call_operand.hbm [shape: f32[1,128], index: 4, kind: output, shape index: {1}]
  %s5 = inlined_call_operand.hbm [shape: f32[1,128], index: 5, kind: output, shape index: {2}]
  %6 = xla_tuple %s3, %s4, %s5
  %s7 = sld [smem:[#allocation0]]
  $region69: #{tpu_custom_call.1} parent=0
    _
  %s9 = ssub.s32 1, %s7
  %s10 = scalar_select 0, %s9, %s7
  $region1: #{tpu_custom_call.1} parent=0
    #allocation4 [shape = 'u8[65536]{0}', space=vmem, size = 0x10000, scoped, tag = 'output window, operand 0']
    #allocation5 [shape = 's32[2]{0}', space=sflag, size = 0x8, scoped, tag = 'scoped memory for tpu_custom_call.1']
    #allocation6 [shape = 'u8[512]{0}', space=vmem, size = 0x400, scoped, tag = 'output window, operand 1, single buffered']
    #allocation7 [shape = 's32[1]{0}', space=sflag, size = 0x4, scoped, tag = 'scoped memory for tpu_custom_call.1']
    #allocation8 [shape = 'u8[512]{0}', space=vmem, size = 0x400, scoped, tag = 'output window, operand 2, single buffered']
    %11 = vsyncpa [#allocation5], 0
    %s12 = scalar_lea.sflag [#allocation5], 1
    %13 = vsyncpa %s12, 0
    %14 = vsyncpa [#allocation7], 0
    loop: start=0, step=1, limit=5
    $region2: #{tpu_custom_call.1} parent=1 // loop_pre_header
      _
    $region3: #{tpu_custom_call.1} parent=1 // loop_header
      %s16 = sphi 0, %s20
      %p17 = scmp.ge.s32.totalorder %s16, 5
      %s26 = sphi 0, %s28
      %s29 = sphi 0, %s26
      %s30 = sphi 0, %s29
      %s46 = sphi 0, %s30
      %s50 = sphi 0, %s50
      %s52 = sphi 0, %s50
      %s53 = sphi 0, %s52
      %s67 = sphi 0, %s53
      %s71 = sphi 0, %s71
      %s73 = sphi 0, %s71
      %s74 = sphi 0, %s73
      %s88 = sphi 0, %s74
      %s94 = sphi 0, %s96
      %s97 = sphi 0, %s94
      %s98 = sphi 0, %s97
      %s114 = sphi 0, %s98
      %s118 = sphi 0, %s118
      %s120 = sphi 0, %s118
      %s121 = sphi 0, %s120
      %s135 = sphi 0, %s121
      %s139 = sphi 0, %s139
      %s141 = sphi 0, %s139
      %s142 = sphi 0, %s141
      %s156 = sphi 0, %s142
    $region4: #{tpu_custom_call.1} parent=1 // loop_header_branch
      %19 = sbr.rel (%p17) target = $region8
    $region5: #{tpu_custom_call.1} parent=1 // loop_body
      %s21 = ssub.s32 %s16, 1
      %s22 = ssub.s32 %s16, 2
      %s23 = sadd.s32 %s16, 1
      %s24 = ssub.s32 %s16, %s23
      %p25 = scmp.eq.s32.totalorder %s24, 0
      %s27 = sadd.s32 %s26, 1
      %s28 = scalar_select %p25, %s26, %s27
      %p31 = pneg %p25
      %p32 = scmp.eq.s32.totalorder %s16, 2
      %p33 = por %p31, %p32
      %p34 = scmp.ne.s32.totalorder %s26, %s29
      %p35 = scmp.eq.s32.totalorder %s16, 0
      %p36 = por %p34, %p35
      %p37 = scmp.ne.s32.totalorder %s26, %s29
      %p38 = scmp.eq.s32.totalorder %s21, 2
      %p39 = por %p37, %p38
      %p40 = scmp.ne.s32.totalorder %s29, %s30
      %p41 = scmp.eq.s32.totalorder %s21, 0
      %p42 = por %p40, %p41
      %p43 = scmp.ne.s32.totalorder %s29, %s30
      %p44 = scmp.eq.s32.totalorder %s22, 2
      %p45 = por %p43, %p44
      %p47 = scmp.ne.s32.totalorder %s30, %s46
      %p48 = scmp.eq.s32.totalorder %s22, 0
      %p49 = por %p47, %p48
      %s51 = sadd.s32 %s50, 1
      %p54 = scmp.eq.s32.totalorder %s16, 2
      %p55 = scmp.ne.s32.totalorder %s50, %s52
      %p56 = scmp.eq.s32.totalorder %s16, 0
      %p57 = por %p55, %p56
      %p58 = scmp.ne.s32.totalorder %s50, %s52
      %p59 = scmp.eq.s32.totalorder %s21, 2
      %p60 = por %p58, %p59
      %p61 = scmp.ne.s32.totalorder %s52, %s53
      %p62 = scmp.eq.s32.totalorder %s21, 0
      %p63 = por %p61, %p62
      %p64 = scmp.ne.s32.totalorder %s52, %s53
      %p65 = scmp.eq.s32.totalorder %s22, 2
      %p66 = por %p64, %p65
      %p68 = scmp.ne.s32.totalorder %s53, %s67
      %p69 = scmp.eq.s32.totalorder %s22, 0
      %p70 = por %p68, %p69
      %s72 = sadd.s32 %s71, 1
      %p75 = scmp.eq.s32.totalorder %s16, 2
      %p76 = scmp.ne.s32.totalorder %s71, %s73
      %p77 = scmp.eq.s32.totalorder %s16, 0
      %p78 = por %p76, %p77
      %p79 = scmp.ne.s32.totalorder %s71, %s73
      %p80 = scmp.eq.s32.totalorder %s21, 2
      %p81 = por %p79, %p80
      %p82 = scmp.ne.s32.totalorder %s73, %s74
      %p83 = scmp.eq.s32.totalorder %s21, 0
      %p84 = por %p82, %p83
      %p85 = scmp.ne.s32.totalorder %s73, %s74
      %p86 = scmp.eq.s32.totalorder %s22, 2
      %p87 = por %p85, %p86
      %p89 = scmp.ne.s32.totalorder %s74, %s88
      %p90 = scmp.eq.s32.totalorder %s22, 0
      %p91 = por %p89, %p90
      %s92 = ssub.s32 %s16, %s23
      %p93 = scmp.eq.s32.totalorder %s92, 0
      %s95 = sadd.s32 %s94, 1
      %s96 = scalar_select %p93, %s94, %s95
      %p99 = pneg %p93
      %p100 = scmp.eq.s32.totalorder %s16, 2
      %p101 = por %p99, %p100
      %p102 = scmp.ne.s32.totalorder %s94, %s97
      %p103 = scmp.eq.s32.totalorder %s16, 0
      %p104 = por %p102, %p103
      %p105 = scmp.ne.s32.totalorder %s94, %s97
      %p106 = scmp.eq.s32.totalorder %s21, 2
      %p107 = por %p105, %p106
      %p108 = scmp.ne.s32.totalorder %s97, %s98
      %p109 = scmp.eq.s32.totalorder %s21, 0
      %p110 = por %p108, %p109
      %p111 = scmp.ne.s32.totalorder %s97, %s98
      %p112 = scmp.eq.s32.totalorder %s22, 2
      %p113 = por %p111, %p112
      %p115 = scmp.ne.s32.totalorder %s98, %s114
      %p116 = scmp.eq.s32.totalorder %s22, 0
      %p117 = por %p115, %p116
      %s119 = sadd.s32 %s118, 1
      %p122 = scmp.eq.s32.totalorder %s16, 2
      %p123 = scmp.ne.s32.totalorder %s118, %s120
      %p124 = scmp.eq.s32.totalorder %s16, 0
      %p125 = por %p123, %p124
      %p126 = scmp.ne.s32.totalorder %s118, %s120
      %p127 = scmp.eq.s32.totalorder %s21, 2
      %p128 = por %p126, %p127
      %p129 = scmp.ne.s32.totalorder %s120, %s121
      %p130 = scmp.eq.s32.totalorder %s21, 0
      %p131 = por %p129, %p130
      %p132 = scmp.ne.s32.totalorder %s120, %s121
      %p133 = scmp.eq.s32.totalorder %s22, 2
      %p134 = por %p132, %p133
      %p136 = scmp.ne.s32.totalorder %s121, %s135
      %p137 = scmp.eq.s32.totalorder %s22, 0
      %p138 = por %p136, %p137
      %s140 = sadd.s32 %s139, 1
      %p143 = scmp.eq.s32.totalorder %s16, 2
      %p144 = scmp.ne.s32.totalorder %s139, %s141
      %p145 = scmp.eq.s32.totalorder %s16, 0
      %p146 = por %p144, %p145
      %p147 = scmp.ne.s32.totalorder %s139, %s141
      %p148 = scmp.eq.s32.totalorder %s21, 2
      %p149 = por %p147, %p148
      %p150 = scmp.ne.s32.totalorder %s141, %s142
      %p151 = scmp.eq.s32.totalorder %s21, 0
      %p152 = por %p150, %p151
      %p153 = scmp.ne.s32.totalorder %s141, %s142
      %p154 = scmp.eq.s32.totalorder %s22, 2
      %p155 = por %p153, %p154
      %p157 = scmp.ne.s32.totalorder %s142, %s156
      %p158 = scmp.eq.s32.totalorder %s22, 0
      %p159 = por %p157, %p158
      %p160 = scmp.le.s32.totalorder 1, %s16
      %p161 = scmp.lt.s32.totalorder %s16, 4
      %p162 = pnand %p160, %p161
      %p163 = pneg %p162
      // Predicated region
      $region9: #{tpu_custom_call.1} parent=5 // pred_check
        _
      $region10: #{tpu_custom_call.1} parent=5 // pred_check_branch
        %165 = sbr.rel (%p162) target = $region12
      $region11: #{tpu_custom_call.1} parent=5 // pred_region
        %s166 = ssub.s32 %s16, 1
        // Predicated region
        $region13: #{tpu_custom_call.1} parent=11 // pred_check
          %p167 = pneg %p63
        $region14: #{tpu_custom_call.1} parent=11 // pred_check_branch
          %169 = sbr.rel (%p167) target = $region16
        $region15: #{tpu_custom_call.1} parent=11 // pred_region
          _
        $region16: #{tpu_custom_call.1} parent=11 // pred_fallthru
          _
        // Predicated region
        $region17: #{tpu_custom_call.1} parent=11 // pred_check
          %p170 = pneg %p84
        $region18: #{tpu_custom_call.1} parent=11 // pred_check_branch
          %172 = sbr.rel (%p170) target = $region20
        $region19: #{tpu_custom_call.1} parent=11 // pred_region
          _
        $region20: #{tpu_custom_call.1} parent=11 // pred_fallthru
          _
      $region12: #{tpu_custom_call.1} parent=5 // pred_fallthru
        _
      %p173 = scmp.lt.s32.totalorder %s16, 3
      // Predicated region
      $region21: #{tpu_custom_call.1} parent=5 // pred_check
        %p174 = pneg %p173
      $region22: #{tpu_custom_call.1} parent=5 // pred_check_branch
        %176 = sbr.rel (%p174) target = $region24
      $region23: #{tpu_custom_call.1} parent=5 // pred_region
        // Predicated region
        $region25: #{tpu_custom_call.1} parent=23 // pred_check
          %p177 = pneg %p36
        $region26: #{tpu_custom_call.1} parent=23 // pred_check_branch
          %179 = sbr.rel (%p177) target = $region28
        $region27: #{tpu_custom_call.1} parent=23 // pred_region
          %s180 = smul.u32 8, %s16
          %p181 = scmp.lt.s32.totalorder %s180, 23
          %s182 = scalar_select %p181, %s180, 23
          %s183 = smul.addr %s182, 4
          %s184 = scalar_lea.vmem %s0, %s183
          %s185 = smul.u32 8, %s16
        $region28: #{tpu_custom_call.1} parent=23 // pred_fallthru
          _
      $region24: #{tpu_custom_call.1} parent=5 // pred_fallthru
        _
      %p186 = scmp.le.s32.totalorder 1, %s16
      %p187 = scmp.lt.s32.totalorder %s16, 4
      %p188 = pnand %p186, %p187
      %p189 = pneg %p188
      // Predicated region
      $region29: #{tpu_custom_call.1} parent=5 // pred_check
        _
      $region30: #{tpu_custom_call.1} parent=5 // pred_check_branch
        %191 = sbr.rel (%p188) target = $region32
      $region31: #{tpu_custom_call.1} parent=5 // pred_region
        %s192 = ssub.s32 %s16, 1
        %s193 = smul.u32 8, %s21
        %p194 = scmp.lt.s32.totalorder %s193, 23
        %s195 = scalar_select %p194, %s193, 23
        %s196 = smul.addr %s195, 4
        %s197 = scalar_lea.vmem %s0, %s196
        %p198 = pneg %p42
        %p199 = pneg %p39
        %p200 = pneg %p63
        %p201 = pneg %p60
        %p202 = pneg %p84
        %p203 = pneg %p81
        %p204 = pneg %p110
        %p205 = pneg %p107
        %s206 = sand.u32 %s97, 1
        %s207 = scalar_lea.sflag [#allocation5], %s206
        %s208 = sand.u32 %s97, 1
        %s209 = smul.addr %s208, 64
        %s210 = scalar_lea.vmem [#allocation4], %s209
        %p211 = pneg %p131
        %p212 = pneg %p128
        %p213 = pneg %p152
        %p214 = pneg %p149
        %s215 = smul.u32 8, %s21
        %p216 = scmp.lt.s32.totalorder %s215, 23
        %s217 = scalar_select %p216, %s215, 23
        %s218 = smul.addr %s217, 4
        %s219 = scalar_lea.vmem %s0, %s218
        %s220 = smul.u32 8, %s21
        %s221 = smul.u32 8, %s21
        %p223 = scmp.eq.s32.totalorder %s21, 0
        // Predicated region
        $region33: #{tpu_custom_call.1} parent=31 // pred_check
          %p224 = pneg %p223
        $region34: #{tpu_custom_call.1} parent=31 // pred_check_branch
          %226 = sbr.rel (%p224) target = $region36
        $region35: #{tpu_custom_call.1} parent=31 // pred_region
          %227 = vst [vmem:[#allocation2] sm:$0x1] 0.0
          %228 = vst [vmem:[#allocation3] sm:$0x1] 0.0
        $region36: #{tpu_custom_call.1} parent=31 // pred_fallthru
          _
        %v229 = vld [vmem:[%s219] sm:$0xf]
        %v230 = vld [vmem:[%s219 + $0x4] sm:$0xf]
        %v231 = vld [vmem:[%s219 + $0x8] sm:$0xf]
        %v232 = vld [vmem:[%s219 + $0xc] sm:$0xf]
        %v233 = vld [vmem:[%s219 + $0x10] sm:$0xf]
        %v234 = vld [vmem:[%s219 + $0x14] sm:$0xf]
        %v235 = vld [vmem:[%s219 + $0x18] sm:$0xf]
        %v236 = vld [vmem:[%s219 + $0x1c] sm:$0xf]
        %v237 = vld [vmem:[%s1] sm:$0xf]
        %v238 = vld [vmem:[%s1 + $0x4] sm:$0xf]
        %v239 = vld [vmem:[%s1 + $0x8] sm:$0xf]
        %v240 = vld [vmem:[%s1 + $0xc] sm:$0x3]
        %v241 = vld [vmem:[%s2] sm:$0x1]
        %v243 = vlaneseq
        %v244 = vshrl.u32 %v243, 7
        %v245 = vsub.s32 0, %v244
        %v246 = vrot.slane %v241, %v245
        %v256 = vunpack.c.l.b16 %v229
        %v257 = vunpack.c.l.b16 %v230
        %v258 = vunpack.c.l.b16 %v231
        %v259 = vunpack.c.l.b16 %v232
        %v260 = vunpack.c.l.b16 %v233
        %v261 = vunpack.c.l.b16 %v234
        %v262 = vunpack.c.l.b16 %v235
        %v263 = vunpack.c.l.b16 %v236
        %v264 = vpack.c.b16 %v257, %v256
        %v265 = vpack.c.b16 %v259, %v258
        %v266 = vpack.c.b16 %v261, %v260
        %v267 = vpack.c.b16 %v263, %v262
        %v272 = vunpack.c.l.b16 %v237
        %v273 = vunpack.c.l.b16 %v238
        %v274 = vunpack.c.l.b16 %v239
        %v275 = vunpack.c.l.b16 %v240
        %v276 = vpack.c.b16 %v273, %v272
        %v277 = vpack.c.b16 %v275, %v274
        %vm279 = vcmask 228352
        %v281 = vsel %vm279, %v264, 0
        %v284 = vsel %vm279, %v265, 0
        %v287 = vsel %vm279, %v266, 0
        %v290 = vsel %vm279, %v267, 0
        %vm292 = vcmask 1045504
        %v294 = vsel %vm292, %v277, 0
        %296 = vmatprep.subr.bf16.mxu0 0
        %297 = vmatpush1.bf16.msra.mxu0 0
        %298 = vmatprep.subr.bf16.mxu0 0
        %299 = vmatpush1.bf16.msra.mxu0 0
        %300 = vmatprep.subr.bf16.mxu0 0
        %301 = vmatpush1.bf16.msra.mxu0 0
        %302 = vmatprep.subr.bf16.mxu0 0
        %303 = vmatpush1.bf16.msra.mxu0 0
        %304 = vmatprep.subr.bf16.mxu0 0
        %305 = vmatpush1.bf16.msra.mxu0 0
        %306 = vmatprep.subr.bf16.mxu0 0
        %307 = vmatpush1.bf16.msra.mxu0 0
        %308 = vmatprep.subr.bf16.mxu0 0
        %309 = vmatpush1.bf16.msra.mxu0 %v294
        %310 = vmatprep.subr.bf16.mxu0 0
        %311 = vmatpush1.bf16.msra.mxu0 %v276
        %312 = vmatprep.subr.bf16.mxu0 0
        %313 = vmatpush2.bf16.msra.mxu0 0
        %314 = vmatprep.subr.bf16.mxu0 0
        %315 = vmatpush2.bf16.msra.mxu0 0
        %316 = vmatprep.subr.bf16.mxu0 0
        %317 = vmatpush2.bf16.msra.mxu0 0
        %318 = vmatprep.subr.bf16.mxu0 0
        %319 = vmatpush2.bf16.msra.mxu0 0
        %320 = vmatprep.subr.bf16.mxu0 0
        %321 = vmatpush2.bf16.msra.mxu0 0
        %322 = vmatprep.subr.bf16.mxu0 0
        %323 = vmatpush2.bf16.msra.mxu0 0
        %324 = vmatprep.subr.bf16.mxu0 0
        %325 = vmatpush2.bf16.msra.mxu0 0
        %326 = vmatprep.subr.bf16.mxu0 0
        %327 = vmatpush2.bf16.msra.mxu0 0
        %328 = vmatprep.mubr.bf16.mxu0 0
        %329 = vmatmul.mubr.bf16.gmra.mxu0 %v281
        %v330 = vpop.f32.mrf.mxu0
        %v331 = vadd.f32 %v246, %v330
        %v332 = vpop.f32.mrf.mxu0
        %v333 = vpop.f32.mrf.mxu0
        %v334 = vadd.f32 %v246, %v333
        %v335 = vpop.f32.mrf.mxu0
        %336 = vmatprep.mubr.bf16.mxu0 0
        %337 = vmatmul.mubr.bf16.gmra.mxu0 %v284
        %v338 = vpop.f32.mrf.mxu0
        %v339 = vadd.f32 %v246, %v338
        %v340 = vpop.f32.mrf.mxu0
        %v341 = vpop.f32.mrf.mxu0
        %v342 = vadd.f32 %v246, %v341
        %v343 = vpop.f32.mrf.mxu0
        %344 = vmatprep.mubr.bf16.mxu0 0
        %345 = vmatmul.mubr.bf16.gmra.mxu0 %v287
        %v346 = vpop.f32.mrf.mxu0
        %v347 = vadd.f32 %v246, %v346
        %v348 = vpop.f32.mrf.mxu0
        %v349 = vpop.f32.mrf.mxu0
        %v350 = vadd.f32 %v246, %v349
        %v351 = vpop.f32.mrf.mxu0
        %352 = vmatprep.mubr.bf16.mxu0 0
        %353 = vmatmul.mubr.bf16.gmra.mxu0 %v290
        %v354 = vpop.f32.mrf.mxu0
        %v355 = vadd.f32 %v246, %v354
        %v356 = vpop.f32.mrf.mxu0
        %v357 = vpop.f32.mrf.mxu0
        %v358 = vadd.f32 %v246, %v357
        %v359 = vpop.f32.mrf.mxu0
        %360 = vdwg.mxu0
        %361 = vst [vmem:[%s210] sm:$0xff] %v331
        %362 = vst [vmem:[%s210 + $0x8] sm:$0xff] %v334
        %363 = vst [vmem:[%s210 + $0x10] sm:$0xff] %v339
        %364 = vst [vmem:[%s210 + $0x18] sm:$0xff] %v342
        %365 = vst [vmem:[%s210 + $0x20] sm:$0xff] %v347
        %366 = vst [vmem:[%s210 + $0x28] sm:$0xff] %v350
        %367 = vst [vmem:[%s210 + $0x30] sm:$0xff] %v355
        %368 = vst [vmem:[%s210 + $0x38] sm:$0xff] %v358
        %s369 = smul.u32 %s21, 64
        %v370 = vlaneseq
        %v371 = vshrl.u32 %v370, 7
        %v372 = vadd.s32 %v371, 8
        %v373 = vadd.s32 %v371, 16
        %v374 = vadd.s32 %v371, 24
        %v375 = vadd.s32 %v371, 32
        %v376 = vadd.s32 %v371, 40
        %v377 = vadd.s32 %v371, 48
        %v378 = vadd.s32 %v371, 56
        %v379 = vstv %s369
        %v380 = vadd.s32 %v379, %v371
        %v381 = vadd.s32 %v379, %v372
        %v382 = vadd.s32 %v379, %v373
        %v383 = vadd.s32 %v379, %v374
        %v384 = vadd.s32 %v379, %v375
        %v385 = vadd.s32 %v379, %v376
        %v386 = vadd.s32 %v379, %v377
        %v387 = vadd.s32 %v379, %v378
        %vm388 = vcmp.lt.s32.totalorder %v380, 162
        %vm389 = vcmp.lt.s32.totalorder %v381, 162
        %vm390 = vcmp.lt.s32.totalorder %v382, 162
        %vm391 = vcmp.lt.s32.totalorder %v383, 162
        %vm392 = vcmp.lt.s32.totalorder %v384, 162
        %vm393 = vcmp.lt.s32.totalorder %v385, 162
        %vm394 = vcmp.lt.s32.totalorder %v386, 162
        %vm395 = vcmp.lt.s32.totalorder %v387, 162
        %v396 = vsel %vm388, 1, 0
        %v397 = vsel %vm389, 1, 0
        %v398 = vsel %vm390, 1, 0
        %v399 = vsel %vm391, 1, 0
        %v400 = vsel %vm392, 1, 0
        %v401 = vsel %vm393, 1, 0
        %v402 = vsel %vm394, 1, 0
        %v403 = vsel %vm395, 1, 0
        %v404 = vcvt.s32.f32 %v396
        %v405 = vcvt.s32.f32 %v397
        %v406 = vcvt.s32.f32 %v398
        %v407 = vcvt.s32.f32 %v399
        %v408 = vcvt.s32.f32 %v400
        %v409 = vcvt.s32.f32 %v401
        %v410 = vcvt.s32.f32 %v402
        %v411 = vcvt.s32.f32 %v403
        %v412 = vmul.f32 %v331, %v404
        %v413 = vmul.f32 %v334, %v405
        %v414 = vmul.f32 %v339, %v406
        %v415 = vmul.f32 %v342, %v407
        %v416 = vmul.f32 %v347, %v408
        %v417 = vmul.f32 %v350, %v409
        %v418 = vmul.f32 %v355, %v410
        %v419 = vmul.f32 %v358, %v411
        %v420 = vld [vmem:[#allocation2] sm:$0x1]
        %v421 = vadd.f32 %v412, %v413
        %v422 = vadd.f32 %v421, %v414
        %v423 = vadd.f32 %v422, %v415
        %v424 = vadd.f32 %v423, %v416
        %v425 = vadd.f32 %v424, %v417
        %v426 = vadd.f32 %v425, %v418
        %v427 = vadd.f32 %v426, %v419
        %v428 = vrot.slane %v427, 4
        %v429 = vadd.f32 %v427, %v428
        %v430 = vrot.slane %v429, 2
        %v431 = vadd.f32 %v429, %v430
        %v432 = vrot.slane %v431, 1
        %v433 = vadd.f32 %v431, %v432
        %v434 = vadd.f32 %v420, %v433
        %435 = vst [vmem:[#allocation2] sm:$0x1] %v434
        %v436 = vld [vmem:[#allocation3] sm:$0x1]
        %v437 = vmul.f32 %v412, %v412
        %v438 = vmul.f32 %v413, %v413
        %v439 = vmul.f32 %v414, %v414
        %v440 = vmul.f32 %v415, %v415
        %v441 = vmul.f32 %v416, %v416
        %v442 = vmul.f32 %v417, %v417
        %v443 = vmul.f32 %v418, %v418
        %v444 = vmul.f32 %v419, %v419
        %v445 = vadd.f32 %v437, %v438
        %v446 = vadd.f32 %v445, %v439
        %v447 = vadd.f32 %v446, %v440
        %v448 = vadd.f32 %v447, %v441
        %v449 = vadd.f32 %v448, %v442
        %v450 = vadd.f32 %v449, %v443
        %v451 = vadd.f32 %v450, %v444
        %v452 = vrot.slane %v451, 4
        %v453 = vadd.f32 %v451, %v452
        %v454 = vrot.slane %v453, 2
        %v455 = vadd.f32 %v453, %v454
        %v456 = vrot.slane %v455, 1
        %v457 = vadd.f32 %v455, %v456
        %v458 = vadd.f32 %v436, %v457
        %459 = vst [vmem:[#allocation3] sm:$0x1] %v458
        %p460 = scmp.eq.s32.totalorder %s21, 2
        // Predicated region
        $region37: #{tpu_custom_call.1} parent=31 // pred_check
          %p461 = pneg %p460
        $region38: #{tpu_custom_call.1} parent=31 // pred_check_branch
          %463 = sbr.rel (%p461) target = $region40
        $region39: #{tpu_custom_call.1} parent=31 // pred_region
          %v464 = vld [vmem:[#allocation2] sm:$0x1]
          %465 = vst [vmem:[#allocation6] sm:$0x1] %v464
          %v466 = vld [vmem:[#allocation3] sm:$0x1]
          %467 = vst [vmem:[#allocation8] sm:$0x1] %v466
        $region40: #{tpu_custom_call.1} parent=31 // pred_fallthru
          _
        %s468 = sand.u32 %s97, 1
        %s469 = scalar_lea.sflag [#allocation5], %s468
        %s470 = sand.u32 %s97, 1
        %s471 = smul.addr %s470, 64
        %s472 = scalar_lea.vmem [#allocation4], %s471
        // Predicated region
        $region41: #{tpu_custom_call.1} parent=31 // pred_check
          %p473 = pneg %p107
        $region42: #{tpu_custom_call.1} parent=31 // pred_check_branch
          %475 = sbr.rel (%p473) target = $region44
        $region43: #{tpu_custom_call.1} parent=31 // pred_region
          %s476 = smul.u32 8, %s21
          %s478 = ssub.s32 1024, 1024
          %479 = vsyncadd %s469, %s478
          %s480 = smul.addr %s476, 128
          %s481 = scalar_lea.hbm %s3, %s480
          %s482 = sshll.u32 %s472, 4
          %s483 = int_to_ptr.vmem [resolvable:$true] %s482
          %488 = dma.vmem_to_hbm [thread:$0]  %s483, 1024, %s481, %s469, 128, 128, 8
        $region44: #{tpu_custom_call.1} parent=31 // pred_fallthru
          _
        // Predicated region
        $region45: #{tpu_custom_call.1} parent=31 // pred_check
          %p489 = pneg %p128
        $region46: #{tpu_custom_call.1} parent=31 // pred_check_branch
          %491 = sbr.rel (%p489) target = $region48
        $region47: #{tpu_custom_call.1} parent=31 // pred_region
          %s493 = ssub.s32 16, 16
          %494 = vsyncadd [#allocation7], %s493
          %s496 = sshll.u32 [#allocation6], 4
          %s497 = int_to_ptr.vmem [resolvable:$true] %s496
          %499 = dma.vmem_to_hbm [thread:$0]  %s497, 16, %s4, [#allocation7]
        $region48: #{tpu_custom_call.1} parent=31 // pred_fallthru
          _
        // Predicated region
        $region49: #{tpu_custom_call.1} parent=31 // pred_check
          %p500 = pneg %p149
        $region50: #{tpu_custom_call.1} parent=31 // pred_check_branch
          %502 = sbr.rel (%p500) target = $region52
        $region51: #{tpu_custom_call.1} parent=31 // pred_region
          %s504 = ssub.s32 16, 16
          %505 = vsyncadd [#allocation7], %s504
          %s507 = sshll.u32 [#allocation8], 4
          %s508 = int_to_ptr.vmem [resolvable:$true] %s507
          %510 = dma.vmem_to_hbm [thread:$0]  %s508, 16, %s5, [#allocation7]
        $region52: #{tpu_custom_call.1} parent=31 // pred_fallthru
          _
        // Predicated region
        $region53: #{tpu_custom_call.1} parent=31 // pred_check
          %p511 = pneg %p128
        $region54: #{tpu_custom_call.1} parent=31 // pred_check_branch
          %513 = sbr.rel (%p511) target = $region56
        $region55: #{tpu_custom_call.1} parent=31 // pred_region
          %514 = dma.done [#allocation7], 16
        $region56: #{tpu_custom_call.1} parent=31 // pred_fallthru
          _
        // Predicated region
        $region57: #{tpu_custom_call.1} parent=31 // pred_check
          %p515 = pneg %p149
        $region58: #{tpu_custom_call.1} parent=31 // pred_check_branch
          %517 = sbr.rel (%p515) target = $region60
        $region59: #{tpu_custom_call.1} parent=31 // pred_region
          %518 = dma.done [#allocation7], 16
        $region60: #{tpu_custom_call.1} parent=31 // pred_fallthru
          _
      $region32: #{tpu_custom_call.1} parent=5 // pred_fallthru
        _
      %p519 = scmp.le.s32.totalorder 2, %s16
      // Predicated region
      $region61: #{tpu_custom_call.1} parent=5 // pred_check
        %p520 = pneg %p519
      $region62: #{tpu_custom_call.1} parent=5 // pred_check_branch
        %522 = sbr.rel (%p520) target = $region64
      $region63: #{tpu_custom_call.1} parent=5 // pred_region
        %s523 = ssub.s32 %s16, 2
        // Predicated region
        $region65: #{tpu_custom_call.1} parent=63 // pred_check
          %p524 = pneg %p113
        $region66: #{tpu_custom_call.1} parent=63 // pred_check_branch
          %526 = sbr.rel (%p524) target = $region68
        $region67: #{tpu_custom_call.1} parent=63 // pred_region
          %s527 = sand.u32 %s98, 1
          %s528 = scalar_lea.sflag [#allocation5], %s527
          %s529 = sand.u32 %s98, 1
          %s530 = smul.addr %s529, 64
          %s531 = scalar_lea.vmem [#allocation4], %s530
          %532 = dma.done %s528, 1024
        $region68: #{tpu_custom_call.1} parent=63 // pred_fallthru
          _
      $region64: #{tpu_custom_call.1} parent=5 // pred_fallthru
        _
    $region6: #{tpu_custom_call.1} parent=1 // loop_footer
      %s20 = sadd.s32 1, %s16
    $region7: #{tpu_custom_call.1} parent=1 // loop_footer_branch
      %15 = sbr.rel target = $region3
    $region8: #{tpu_custom_call.1} parent=1 // loop_exit
      _
    %533 = vsyncpa [#allocation5], 1
    %s534 = scalar_lea.sflag [#allocation5], 1
    %535 = vsyncpa %s534, 1
    %536 = vsyncpa [#allocation7], 1

</llo_original>
